<compile_context>
chip_gen: v6e
topology: v6e:2x2x1
jax: 0.10.0
libtpu: 0.0.40
codegen_flags: <defaults>
</compile_context>

<pallas_src>
import functools

import jax
import jax.numpy as jnp
import numpy as np
from jax.experimental import pallas as pl
from jax.experimental.pallas import tpu as pltpu

_ROWS = 8          # sublane rows in the packed state slab (one f32 vreg at P=128)
_R_MEAN_L = 0      # running_mean_L
_R_MEAN_l = 1      # running_mean_l
_R_S_l = 2         # running_S_l
_R_STD_l = 3       # running_std_l
_R_ALPHA = 4       # alphas
_R_ITER = 5        # current_iter, replicated across lanes as float32
# rows 6-7 unused (stay zero; preserved through the aliased writeback)


def _cov_kernel(losses_ref,      # SMEM (n,)   f32 : this step's unweighted losses
                state_ref,       # VMEM (8, P) f32 : packed running state
                new_state_ref,   # VMEM (8, P) f32 : packed state out (aliased)
                loss_ref,        # SMEM (1,)   f32 : weighted loss (nan on skip)
                *, num_losses, mean_decay, mean_decay_param):
    lanes = state_ref.shape[1]
    lane_id = jax.lax.broadcasted_iota(jnp.int32, (1, lanes), 1)
    valid = lane_id < num_losses

    # Build the (1, P) loss vector from the SMEM scalars (num_losses is small).
    L = jnp.zeros((1, lanes), jnp.float32)
    for i in range(num_losses):
        L = jnp.where(lane_id == i, losses_ref[i], L)

    # Per-row loads used by the arithmetic (old alphas row is only needed via
    # the whole-slab load below for the NaN-skip select).
    mean_L = state_ref[_R_MEAN_L:_R_MEAN_L + 1, :]
    mean_l = state_ref[_R_MEAN_l:_R_MEAN_l + 1, :]
    S_l    = state_ref[_R_S_l:_R_S_l + 1, :]
    std_l  = state_ref[_R_STD_l:_R_STD_l + 1, :]
    t_prev = state_ref[_R_ITER:_R_ITER + 1, :]        # replicated float counter
    old_slab = state_ref[...]                          # (8, P), one unmasked load

    t = t_prev + 1.0                                   # candidate current_iter
    is_first = t < 0.5                                 # current_iter == 0
    is_warm = t < 1.5                                  # current_iter <= 1

    # --- NaN guard: skip state update / iter bump when any real loss is nan ----
    nan_ind = jnp.where(jnp.isnan(L) & valid, 1.0, 0.0)
    keep = jnp.max(nan_ind, axis=1, keepdims=True) > 0.5        # (1, 1)

    # --- loss ratios ------------------------------------------------------------
    L0 = jnp.where(is_first, L, mean_L)
    l = jnp.where(valid, L / L0, 0.0)

    # --- alphas -----------------------------------------------------------------
    inv_n = jnp.float32(1.0 / num_losses)
    ls = jnp.where(valid, std_l / mean_l, 0.0)
    ls_sum = jnp.sum(ls, axis=1, keepdims=True)                  # (1, 1)
    alphas = jnp.where(valid, jnp.where(is_warm, inv_n, ls / ls_sum), 0.0)

    # --- mean decay parameter ----------------------------------------------------
    if mean_decay:
        mp = jnp.where(is_first, 0.0, jnp.float32(mean_decay_param))
    else:
        mp = 1.0 - 1.0 / (t + 1.0)          # equals 0 exactly at current_iter == 0

    # --- Welford-style running statistics ----------------------------------------
    new_mean_l = mp * mean_l + (1.0 - mp) * l
    new_S_l = S_l + (l - mean_l) * (l - new_mean_l)
    new_std_l = jnp.where(valid, jnp.sqrt(new_S_l / (t + 1.0) + 1e-8), 0.0)
    new_mean_L = mp * mean_L + (1.0 - mp) * L

    # --- weighted loss (single rank-0 reduce -> SMEM) -----------------------------
    # A NaN in any valid lane of L propagates through alphas * L, so the PyTorch
    # "return nan" behaviour falls out of the sum with no extra scalar select.
    loss_ref[0] = jnp.sum(jnp.where(valid, alphas * L, 0.0))

    # --- single full-slab writeback (one unmasked (8, P) store) -------------------
    row_id = jax.lax.broadcasted_iota(jnp.int32, (_ROWS, lanes), 0)
    new_slab = old_slab                                 # rows 6-7 stay as-is (zeros)
    for r, row in ((_R_MEAN_L, new_mean_L), (_R_MEAN_l, new_mean_l),
                   (_R_S_l, new_S_l), (_R_STD_l, new_std_l),
                   (_R_ALPHA, alphas), (_R_ITER, t)):
        new_slab = jnp.where(row_id == r, row, new_slab)
    new_state_ref[...] = jnp.where(keep, old_slab, new_slab)


def _padded_lanes(num_losses):
    return max(128, ((num_losses + 127) // 128) * 128)


def init_state(num_losses):
    """Mirrors CoVWeightedLoss.__init__ (zero running stats, current_iter = -1)."""
    state = jnp.zeros((_ROWS, _padded_lanes(num_losses)), jnp.float32)
    return state.at[_R_ITER, :].set(-1.0)


@functools.partial(jax.jit,
                   static_argnames=("mean_decay", "mean_decay_param", "training"),
                   donate_argnames=("state",))
def cov_weighted_loss_step(unweighted_losses, state, *, mean_decay=False,
                           mean_decay_param=0.0, training=True):
    """One forward() call.  `unweighted_losses` is a (num_losses,) array.

    Returns (loss, new_state).  `state` is donated and updated in place."""
    L = jnp.asarray(unweighted_losses, jnp.float32).reshape(-1)
    n = L.shape[0]

    if state.shape != (_ROWS, _padded_lanes(n)):
        raise ValueError("state shape does not match num_losses; use init_state(n)")

    if not training:
        # eval path: plain sum (NaN propagates), no state change.
        return jnp.sum(L), state

    kern = functools.partial(_cov_kernel, num_losses=n, mean_decay=bool(mean_decay),
                             mean_decay_param=float(mean_decay_param or 0.0))

    smem = pl.BlockSpec(memory_space=pltpu.MemorySpace.SMEM)
    vmem = pl.BlockSpec(memory_space=pltpu.MemorySpace.VMEM)
    lanes = state.shape[1]

    new_state, loss_out = pl.pallas_call(
        kern,
        in_specs=[smem, vmem],
        out_specs=[vmem, smem],
        out_shape=[jax.ShapeDtypeStruct(state.shape, jnp.float32),
                   jax.ShapeDtypeStruct((1,), jnp.float32)],
        input_output_aliases={1: 0},          # packed state updated in place
        cost_estimate=pl.CostEstimate(
            flops=int(40 * lanes),
            transcendentals=int(2 * lanes),
            bytes_accessed=int(2 * state.size * 4 + 4 * n + 4)),
    )(L, state)

    return loss_out[0], new_state


# ---------------- pure-numpy reference (mirrors the PyTorch forward) ------------
def _ref_step(L, st, mean_decay=False, mean_decay_param=0.0):
    L = np.asarray(L, np.float32)
    if np.isnan(L).any():
        return float('nan'), st
    st = dict(st)
    st['iter'] += 1
    t = st['iter']
    L0 = L.copy() if t == 0 else st['mean_L']
    l = L / L0
    if t <= 1:
        alphas = np.ones_like(L) / L.size
    else:
        ls = st['std_l'] / st['mean_l']
        alphas = ls / ls.sum()
    if t == 0:
        mp = 0.0
    elif mean_decay:
        mp = mean_decay_param
    else:
        mp = 1.0 - 1.0 / (t + 1)
    new_mean_l = mp * st['mean_l'] + (1.0 - mp) * l
    st['S_l'] = st['S_l'] + (l - st['mean_l']) * (l - new_mean_l)
    st['mean_l'] = new_mean_l
    st['std_l'] = np.sqrt(st['S_l'] / (t + 1) + 1e-8)
    st['mean_L'] = mp * st['mean_L'] + (1.0 - mp) * L
    st['alphas'] = alphas
    return float((alphas * L).sum()), st


if __name__ == "__main__":
    num_losses = 4
    num_steps = 6

    key = jax.random.PRNGKey(0)
    losses_seq = jax.random.uniform(key, (num_steps, num_losses),
                                    minval=0.2, maxval=2.0, dtype=jnp.float32)
    losses_np = np.asarray(losses_seq)

    state = init_state(num_losses)
    ref_st = dict(iter=-1,
                  alphas=np.zeros(num_losses, np.float32),
                  mean_L=np.zeros(num_losses, np.float32),
                  mean_l=np.zeros(num_losses, np.float32),
                  S_l=np.zeros(num_losses, np.float32),
                  std_l=np.zeros(num_losses, np.float32))

    ok = True
    for step in range(num_steps):
        loss, state = cov_weighted_loss_step(losses_seq[step], state)
        loss = float(jax.block_until_ready(loss))
        ref_loss, ref_st = _ref_step(losses_np[step], ref_st)
        if (not np.isfinite(loss)) or abs(loss - ref_loss) > 1e-4:
            ok = False

    # Check final running statistics and iteration counter against the reference.
    packed = np.asarray(state)
    if int(round(float(packed[_R_ITER, 0]))) != ref_st['iter']:
        ok = False
    for row, name in ((_R_MEAN_L, 'mean_L'), (_R_MEAN_l, 'mean_l'),
                      (_R_S_l, 'S_l'), (_R_STD_l, 'std_l'), (_R_ALPHA, 'alphas')):
        if not np.allclose(packed[row, :num_losses], ref_st[name],
                           rtol=1e-4, atol=1e-5):
            ok = False

    # NaN guard: loss must be nan, running stats and iteration counter unchanged.
    packed_before = np.asarray(state)   # snapshot BEFORE donation invalidates it
    nan_losses = losses_seq[0].at[1].set(jnp.nan)
    nan_loss, state = cov_weighted_loss_step(nan_losses, state)
    nan_loss = float(jax.block_until_ready(nan_loss))
    if not np.isnan(nan_loss):
        ok = False
    packed_after = np.asarray(state)
    if not np.allclose(packed_after, packed_before, rtol=1e-6, atol=1e-6):
        ok = False

    print("KERNEL_OK" if ok else "KERNEL_MISMATCH")
</pallas_src>

<mosaic_0001>
module attributes {stable_mosaic.version = 11 : i64} {
  func.func @_cov_kernel(%arg0: memref<4xf32, #tpu.memory_space<smem>>, %arg1: memref<8x128xf32, #tpu.memory_space<vmem>>, %arg2: memref<8x128xf32, #tpu.memory_space<vmem>>, %arg3: memref<1xf32, #tpu.memory_space<smem>>) attributes {dimension_semantics = [], scalar_prefetch = 0 : i64, scratch_operands = 0 : i64, tpu.core_type = #tpu.core_type<tc>} {
    %0 = tpu.iota {dimensions = array<i32: 1>} : vector<1x128xi32>
    %c4_i32 = arith.constant 4 : i32
    %1 = vector.broadcast %c4_i32 : i32 to vector<1x128xi32>
    %2 = arith.cmpi slt, %0, %1 : vector<1x128xi32>
    %cst = arith.constant 0.000000e+00 : f32
    %3 = vector.broadcast %cst : f32 to vector<1x128xf32>
    %c0_i32 = arith.constant 0 : i32
    %4 = vector.broadcast %c0_i32 : i32 to vector<1x128xi32>
    %5 = arith.cmpi eq, %0, %4 : vector<1x128xi32>
    %c0 = arith.constant 0 : index
    %6 = memref.load %arg0[%c0] : memref<4xf32, #tpu.memory_space<smem>>
    %7 = vector.broadcast %6 : f32 to vector<1x128xf32>
    %8 = arith.select %5, %7, %3 : vector<1x128xi1>, vector<1x128xf32>
    %c1_i32 = arith.constant 1 : i32
    %9 = vector.broadcast %c1_i32 : i32 to vector<1x128xi32>
    %10 = arith.cmpi eq, %0, %9 : vector<1x128xi32>
    %c1 = arith.constant 1 : index
    %11 = memref.load %arg0[%c1] : memref<4xf32, #tpu.memory_space<smem>>
    %12 = vector.broadcast %11 : f32 to vector<1x128xf32>
    %13 = arith.select %10, %12, %8 : vector<1x128xi1>, vector<1x128xf32>
    %c2_i32 = arith.constant 2 : i32
    %14 = vector.broadcast %c2_i32 : i32 to vector<1x128xi32>
    %15 = arith.cmpi eq, %0, %14 : vector<1x128xi32>
    %c2 = arith.constant 2 : index
    %16 = memref.load %arg0[%c2] : memref<4xf32, #tpu.memory_space<smem>>
    %17 = vector.broadcast %16 : f32 to vector<1x128xf32>
    %18 = arith.select %15, %17, %13 : vector<1x128xi1>, vector<1x128xf32>
    %c3_i32 = arith.constant 3 : i32
    %19 = vector.broadcast %c3_i32 : i32 to vector<1x128xi32>
    %20 = arith.cmpi eq, %0, %19 : vector<1x128xi32>
    %c3 = arith.constant 3 : index
    %21 = memref.load %arg0[%c3] : memref<4xf32, #tpu.memory_space<smem>>
    %22 = vector.broadcast %21 : f32 to vector<1x128xf32>
    %23 = arith.select %20, %22, %18 : vector<1x128xi1>, vector<1x128xf32>
    %c0_0 = arith.constant 0 : index
    %c0_1 = arith.constant 0 : index
    %24 = vector.load %arg1[%c0_0, %c0_1] : memref<8x128xf32, #tpu.memory_space<vmem>>, vector<1x128xf32>
    %c1_2 = arith.constant 1 : index
    %c0_3 = arith.constant 0 : index
    %25 = vector.load %arg1[%c1_2, %c0_3] : memref<8x128xf32, #tpu.memory_space<vmem>>, vector<1x128xf32>
    %c2_4 = arith.constant 2 : index
    %c0_5 = arith.constant 0 : index
    %26 = vector.load %arg1[%c2_4, %c0_5] : memref<8x128xf32, #tpu.memory_space<vmem>>, vector<1x128xf32>
    %c3_6 = arith.constant 3 : index
    %c0_7 = arith.constant 0 : index
    %27 = vector.load %arg1[%c3_6, %c0_7] : memref<8x128xf32, #tpu.memory_space<vmem>>, vector<1x128xf32>
    %c5 = arith.constant 5 : index
    %c0_8 = arith.constant 0 : index
    %28 = vector.load %arg1[%c5, %c0_8] : memref<8x128xf32, #tpu.memory_space<vmem>>, vector<1x128xf32>
    %c0_9 = arith.constant 0 : index
    %c0_10 = arith.constant 0 : index
    %29 = vector.load %arg1[%c0_9, %c0_10] : memref<8x128xf32, #tpu.memory_space<vmem>>, vector<8x128xf32>
    %cst_11 = arith.constant 1.000000e+00 : f32
    %30 = vector.broadcast %cst_11 : f32 to vector<1x128xf32>
    %31 = arith.addf %28, %30 : vector<1x128xf32>
    %cst_12 = arith.constant 5.000000e-01 : f32
    %32 = vector.broadcast %cst_12 : f32 to vector<1x128xf32>
    %33 = arith.cmpf olt, %31, %32 : vector<1x128xf32>
    %cst_13 = arith.constant 1.500000e+00 : f32
    %34 = vector.broadcast %cst_13 : f32 to vector<1x128xf32>
    %35 = arith.cmpf olt, %31, %34 : vector<1x128xf32>
    %36 = arith.cmpf one, %23, %23 : vector<1x128xf32>
    %37 = arith.andi %36, %2 : vector<1x128xi1>
    %cst_14 = arith.constant 1.000000e+00 : f32
    %cst_15 = arith.constant 0.000000e+00 : f32
    %38 = vector.broadcast %cst_14 : f32 to vector<1x128xf32>
    %39 = vector.broadcast %cst_15 : f32 to vector<1x128xf32>
    %40 = arith.select %37, %38, %39 : vector<1x128xi1>, vector<1x128xf32>
    %cst_16 = arith.constant dense<0xFF800000> : vector<1xf32>
    %41 = vector.multi_reduction <maximumf>, %40, %cst_16 [1] : vector<1x128xf32> to vector<1xf32>
    %42 = vector.shape_cast %41 : vector<1xf32> to vector<1x1xf32>
    %cst_17 = arith.constant 5.000000e-01 : f32
    %43 = vector.broadcast %cst_17 : f32 to vector<1x1xf32>
    %44 = arith.cmpf ogt, %42, %43 : vector<1x1xf32>
    %45 = arith.select %33, %23, %24 : vector<1x128xi1>, vector<1x128xf32>
    %46 = arith.divf %23, %45 : vector<1x128xf32>
    %cst_18 = arith.constant 0.000000e+00 : f32
    %47 = vector.broadcast %cst_18 : f32 to vector<1x128xf32>
    %48 = arith.select %2, %46, %47 : vector<1x128xi1>, vector<1x128xf32>
    %49 = arith.divf %27, %25 : vector<1x128xf32>
    %cst_19 = arith.constant 0.000000e+00 : f32
    %50 = vector.broadcast %cst_19 : f32 to vector<1x128xf32>
    %51 = arith.select %2, %49, %50 : vector<1x128xi1>, vector<1x128xf32>
    %cst_20 = arith.constant dense<0.000000e+00> : vector<1xf32>
    %52 = vector.multi_reduction <add>, %51, %cst_20 [1] : vector<1x128xf32> to vector<1xf32>
    %53 = vector.shape_cast %52 : vector<1xf32> to vector<1x1xf32>
    %54 = vector.broadcast %53 : vector<1x1xf32> to vector<1x128xf32>
    %55 = arith.divf %51, %54 : vector<1x128xf32>
    %cst_21 = arith.constant 2.500000e-01 : f32
    %56 = vector.broadcast %cst_21 : f32 to vector<1x128xf32>
    %57 = arith.select %35, %56, %55 : vector<1x128xi1>, vector<1x128xf32>
    %cst_22 = arith.constant 0.000000e+00 : f32
    %58 = vector.broadcast %cst_22 : f32 to vector<1x128xf32>
    %59 = arith.select %2, %57, %58 : vector<1x128xi1>, vector<1x128xf32>
    %cst_23 = arith.constant 1.000000e+00 : f32
    %60 = vector.broadcast %cst_23 : f32 to vector<1x128xf32>
    %61 = arith.addf %31, %60 : vector<1x128xf32>
    %cst_24 = arith.constant 1.000000e+00 : f32
    %62 = vector.broadcast %cst_24 : f32 to vector<1x128xf32>
    %63 = arith.divf %62, %61 : vector<1x128xf32>
    %cst_25 = arith.constant 1.000000e+00 : f32
    %64 = vector.broadcast %cst_25 : f32 to vector<1x128xf32>
    %65 = arith.subf %64, %63 : vector<1x128xf32>
    %66 = arith.mulf %65, %25 : vector<1x128xf32>
    %cst_26 = arith.constant 1.000000e+00 : f32
    %67 = vector.broadcast %cst_26 : f32 to vector<1x128xf32>
    %68 = arith.subf %67, %65 : vector<1x128xf32>
    %69 = arith.mulf %68, %48 : vector<1x128xf32>
    %70 = arith.addf %66, %69 : vector<1x128xf32>
    %71 = arith.subf %48, %25 : vector<1x128xf32>
    %72 = arith.subf %48, %70 : vector<1x128xf32>
    %73 = arith.mulf %71, %72 : vector<1x128xf32>
    %74 = arith.addf %26, %73 : vector<1x128xf32>
    %cst_27 = arith.constant 1.000000e+00 : f32
    %75 = vector.broadcast %cst_27 : f32 to vector<1x128xf32>
    %76 = arith.addf %31, %75 : vector<1x128xf32>
    %77 = arith.divf %74, %76 : vector<1x128xf32>
    %cst_28 = arith.constant 9.99999993E-9 : f32
    %78 = vector.broadcast %cst_28 : f32 to vector<1x128xf32>
    %79 = arith.addf %77, %78 : vector<1x128xf32>
    %80 = math.sqrt %79 : vector<1x128xf32>
    %cst_29 = arith.constant 0.000000e+00 : f32
    %81 = vector.broadcast %cst_29 : f32 to vector<1x128xf32>
    %82 = arith.select %2, %80, %81 : vector<1x128xi1>, vector<1x128xf32>
    %83 = arith.mulf %65, %24 : vector<1x128xf32>
    %cst_30 = arith.constant 1.000000e+00 : f32
    %84 = vector.broadcast %cst_30 : f32 to vector<1x128xf32>
    %85 = arith.subf %84, %65 : vector<1x128xf32>
    %86 = arith.mulf %85, %23 : vector<1x128xf32>
    %87 = arith.addf %83, %86 : vector<1x128xf32>
    %88 = arith.mulf %59, %23 : vector<1x128xf32>
    %cst_31 = arith.constant 0.000000e+00 : f32
    %89 = vector.broadcast %cst_31 : f32 to vector<1x128xf32>
    %90 = arith.select %2, %88, %89 : vector<1x128xi1>, vector<1x128xf32>
    %91 = vector.shape_cast %90 : vector<1x128xf32> to vector<1x1x128xf32>
    %cst_32 = arith.constant dense<0.000000e+00> : vector<1xf32>
    %92 = vector.multi_reduction <add>, %91, %cst_32 [1, 2] : vector<1x1x128xf32> to vector<1xf32>
    %93 = vector.shape_cast %92 : vector<1xf32> to vector<1x1x1xf32>
    %94 = vector.extract %93[0, 0, 0] : f32 from vector<1x1x1xf32>
    %c0_33 = arith.constant 0 : index
    %95 = memref.load %arg3[%c0_33] : memref<1xf32, #tpu.memory_space<smem>>
    memref.store %94, %arg3[%c0_33] : memref<1xf32, #tpu.memory_space<smem>>
    %96 = tpu.iota {dimensions = array<i32: 0>} : vector<8x128xi32>
    %c0_i32_34 = arith.constant 0 : i32
    %97 = vector.broadcast %c0_i32_34 : i32 to vector<8x128xi32>
    %98 = arith.cmpi eq, %96, %97 : vector<8x128xi32>
    %99 = vector.shape_cast %87 : vector<1x128xf32> to vector<1x128xf32>
    %100 = vector.broadcast %99 : vector<1x128xf32> to vector<8x128xf32>
    %101 = arith.select %98, %100, %29 : vector<8x128xi1>, vector<8x128xf32>
    %c1_i32_35 = arith.constant 1 : i32
    %102 = vector.broadcast %c1_i32_35 : i32 to vector<8x128xi32>
    %103 = arith.cmpi eq, %96, %102 : vector<8x128xi32>
    %104 = vector.shape_cast %70 : vector<1x128xf32> to vector<1x128xf32>
    %105 = vector.broadcast %104 : vector<1x128xf32> to vector<8x128xf32>
    %106 = arith.select %103, %105, %101 : vector<8x128xi1>, vector<8x128xf32>
    %c2_i32_36 = arith.constant 2 : i32
    %107 = vector.broadcast %c2_i32_36 : i32 to vector<8x128xi32>
    %108 = arith.cmpi eq, %96, %107 : vector<8x128xi32>
    %109 = vector.shape_cast %74 : vector<1x128xf32> to vector<1x128xf32>
    %110 = vector.broadcast %109 : vector<1x128xf32> to vector<8x128xf32>
    %111 = arith.select %108, %110, %106 : vector<8x128xi1>, vector<8x128xf32>
    %c3_i32_37 = arith.constant 3 : i32
    %112 = vector.broadcast %c3_i32_37 : i32 to vector<8x128xi32>
    %113 = arith.cmpi eq, %96, %112 : vector<8x128xi32>
    %114 = vector.shape_cast %82 : vector<1x128xf32> to vector<1x128xf32>
    %115 = vector.broadcast %114 : vector<1x128xf32> to vector<8x128xf32>
    %116 = arith.select %113, %115, %111 : vector<8x128xi1>, vector<8x128xf32>
    %c4_i32_38 = arith.constant 4 : i32
    %117 = vector.broadcast %c4_i32_38 : i32 to vector<8x128xi32>
    %118 = arith.cmpi eq, %96, %117 : vector<8x128xi32>
    %119 = vector.shape_cast %59 : vector<1x128xf32> to vector<1x128xf32>
    %120 = vector.broadcast %119 : vector<1x128xf32> to vector<8x128xf32>
    %121 = arith.select %118, %120, %116 : vector<8x128xi1>, vector<8x128xf32>
    %c5_i32 = arith.constant 5 : i32
    %122 = vector.broadcast %c5_i32 : i32 to vector<8x128xi32>
    %123 = arith.cmpi eq, %96, %122 : vector<8x128xi32>
    %124 = vector.shape_cast %31 : vector<1x128xf32> to vector<1x128xf32>
    %125 = vector.broadcast %124 : vector<1x128xf32> to vector<8x128xf32>
    %126 = arith.select %123, %125, %121 : vector<8x128xi1>, vector<8x128xf32>
    %127 = vector.shape_cast %44 : vector<1x1xi1> to vector<1x1xi1>
    %128 = vector.broadcast %127 : vector<1x1xi1> to vector<8x128xi1>
    %129 = arith.select %128, %29, %126 : vector<8x128xi1>, vector<8x128xf32>
    %c0_39 = arith.constant 0 : index
    %c0_40 = arith.constant 0 : index
    %130 = vector.load %arg2[%c0_39, %c0_40] : memref<8x128xf32, #tpu.memory_space<vmem>>, vector<8x128xf32>
    tpu.vector_store %arg2[%c0_39, %c0_40], %129 {strides = array<i32>} : memref<8x128xf32, #tpu.memory_space<vmem>>, vector<8x128xf32>,
    return
  }
}

</mosaic_0001>

<llo_original>
// kernel: cov_weighted_loss_step.1
$region0: #{cov_weighted_loss_step.1}
  #allocation0 [shape = 'u32[]', space=smem, size = 0x4, offset = 0x4, fixed_abs, tag = 'smem constant byte address 0x4 - core index']
  #allocation1 [shape = 'u32[144,128]{1,0:T(1,128)}', space=vmem, size = 0x12000, scoped, tag = 'internal scratch']
  %s0 = inlined_call_operand.hbm [shape: f32[4], index: 0, kind: input, shape index: {}]
  %s1 = inlined_call_operand.hbm [shape: f32[8,128], index: 1, kind: input, shape index: {}, may-alias: {1,2}]
  %s2 = inlined_call_operand.hbm [shape: f32[8,128], index: 2, kind: output, shape index: {0}, may-alias: {1,2}]
  %s3 = inlined_call_operand.hbm [shape: f32[1], index: 3, kind: output, shape index: {1}]
  %4 = xla_tuple %s2, %s3
  %s5 = sld [smem:[#allocation0]]
  $region34: #{cov_weighted_loss_step.1} parent=0
    _
  %s7 = ssub.s32 1, %s5
  %s8 = scalar_select 0, %s7, %s5
  $region1: #{cov_weighted_loss_step.1} parent=0
    #allocation2 [shape = 'u8[512]{0}', space=smem, size = 0x200, scoped, tag = 'input window, operand 0, single buffered']
    #allocation3 [shape = 's32[1]{0}', space=sflag, size = 0x4, scoped, tag = 'scoped memory for cov_weighted_loss_step.1']
    #allocation4 [shape = 's32[1]{0}', space=sflag, size = 0x4, scoped, tag = 'scoped memory for cov_weighted_loss_step.1']
    #allocation5 [shape = 's32[1]{0}', space=sflag, size = 0x4, scoped, tag = 'scoped memory for cov_weighted_loss_step.1']
    #allocation6 [shape = 's32[1]{0}', space=sflag, size = 0x4, scoped, tag = 'scoped memory for cov_weighted_loss_step.1']
    #allocation7 [shape = 'u8[4096]{0}', space=vmem, size = 0x1000, scoped, tag = 'input window, operand 1, single buffered']
    #allocation8 [shape = 'u8[4096]{0}', space=vmem, size = 0x1000, scoped, tag = 'output window, operand 0, single buffered']
    #allocation9 [shape = 'u8[512]{0}', space=smem, size = 0x200, scoped, tag = 'output window, operand 1, single buffered']
    %9 = vsyncpa [#allocation5], 0
    %10 = vsyncpa [#allocation3], 0
    %11 = vsyncpa [#allocation4], 0
    %12 = vsyncpa [#allocation6], 0
    // Predicated region
    $region2: #{cov_weighted_loss_step.1} parent=1 // pred_check
      _
    $region3: #{cov_weighted_loss_step.1} parent=1 // pred_check_branch
      %14 = sbr.rel (0) target = $region5
    $region4: #{cov_weighted_loss_step.1} parent=1 // pred_region
      %s16 = ssub.s32 16, 16
      %17 = vsyncadd [#allocation5], %s16
      %20 = dma.hbm_to_smem %s0, 16, [#allocation2], [#allocation5]
    $region5: #{cov_weighted_loss_step.1} parent=1 // pred_fallthru
      _
    // Predicated region
    $region6: #{cov_weighted_loss_step.1} parent=1 // pred_check
      _
    $region7: #{cov_weighted_loss_step.1} parent=1 // pred_check_branch
      %22 = sbr.rel (0) target = $region9
    $region8: #{cov_weighted_loss_step.1} parent=1 // pred_region
      %s24 = ssub.s32 128, 128
      %25 = vsyncadd [#allocation3], %s24
      %s27 = sshll.u32 [#allocation7], 4
      %s28 = int_to_ptr.vmem [resolvable:$true] %s27
      %30 = dma.hbm_to_vmem [thread:$0]  %s1, 128, %s28, [#allocation3]
    $region9: #{cov_weighted_loss_step.1} parent=1 // pred_fallthru
      _
    // Predicated region
    $region10: #{cov_weighted_loss_step.1} parent=1 // pred_check
      _
    $region11: #{cov_weighted_loss_step.1} parent=1 // pred_check_branch
      %32 = sbr.rel (0) target = $region13
    $region12: #{cov_weighted_loss_step.1} parent=1 // pred_region
      %33 = dma.done [#allocation5], 16
    $region13: #{cov_weighted_loss_step.1} parent=1 // pred_fallthru
      _
    // Predicated region
    $region14: #{cov_weighted_loss_step.1} parent=1 // pred_check
      _
    $region15: #{cov_weighted_loss_step.1} parent=1 // pred_check_branch
      %35 = sbr.rel (0) target = $region17
    $region16: #{cov_weighted_loss_step.1} parent=1 // pred_region
      %36 = dma.done [#allocation3], 128
    $region17: #{cov_weighted_loss_step.1} parent=1 // pred_fallthru
      _
    %37 = sfence
    %v38 = vlaneseq
    %v39 = vand.u32 %v38, 127
    %vm40 = vcmp.lt.s32.totalorder %v39, 4
    %vm41 = vcmp.eq.s32.totalorder %v39, 0
    %s42 = sld [smem:[#allocation2]]
    %v43 = vstv %s42
    %v44 = vsel %vm41, %v43, 0.0
    %vm45 = vcmp.eq.s32.totalorder %v39, 1
    %s46 = sld [smem:[#allocation2 + $0x1]]
    %v47 = vstv %s46
    %v48 = vsel %vm45, %v47, %v44
    %vm49 = vcmp.eq.s32.totalorder %v39, 2
    %s50 = sld [smem:[#allocation2 + $0x2]]
    %v51 = vstv %s50
    %v52 = vsel %vm49, %v51, %v48
    %vm53 = vcmp.eq.s32.totalorder %v39, 3
    %s54 = sld [smem:[#allocation2 + $0x3]]
    %v55 = vstv %s54
    %v56 = vsel %vm53, %v55, %v52
    %v57 = vld [vmem:[#allocation7] sm:$0x1]
    %v58 = vld [vmem:[#allocation7 + $0x1] sm:$0x1]
    %v59 = vld [vmem:[#allocation7 + $0x2] sm:$0x1]
    %v60 = vld [vmem:[#allocation7 + $0x3] sm:$0x1]
    %v61 = vld [vmem:[#allocation7 + $0x5] sm:$0x1]
    %v62 = vld [vmem:[#allocation7] sm:$0xff]
    %v63 = vadd.f32 %v61, 1.0
    %vm64 = vcmp.lt.f32.partialorder %v63, 0.5
    %vm65 = vcmp.lt.f32.partialorder %v63, 1.5
    %vm66 = vcmp.ne.f32.partialorder %v56, %v56
    %vm67 = vmand %vm66, %vm40
    %v68 = vsel %vm67, 1.0, 0.0
    %69 = vmax.xlane.f32.xlu0 %v68
    %v70 = vpop.xlane.xlu0 %69
    %vm71 = vcmp.gt.f32.partialorder %v70, 0.5
    %v72 = vsel %vm64, %v56, %v57
    %v73 = vrcp.pop %v72
    %v74 = vmul.f32 %v56, %v73
    %v75 = vsel %vm40, %v74, 0.0
    %v76 = vrcp.pop %v58
    %v77 = vmul.f32 %v60, %v76
    %v78 = vsel %vm40, %v77, 0.0
    %vm79 = vcmask 1040384
    %v80 = vsel %vm79, %v78, 0.0
    %81 = vadd.xlane.f32.xlu0 %v80
    %v82 = vpop.xlane.xlu0 %81
    %v83 = vrcp.pop %v82
    %v84 = vmul.f32 %v78, %v83
    %v85 = vsel %vm65, 0.25, %v84
    %v86 = vsel %vm40, %v85, 0.0
    %v87 = vadd.f32 %v63, 1.0
    %v88 = vrcp.pop %v87
    %v89 = vmul.f32 1.0, %v88
    %v90 = vsub.f32 1.0, %v89
    %v91 = vmul.f32 %v90, %v58
    %v92 = vsub.f32 1.0, %v90
    %v93 = vmul.f32 %v92, %v75
    %v94 = vadd.f32 %v91, %v93
    %v95 = vsub.f32 %v75, %v58
    %v96 = vsub.f32 %v75, %v94
    %v97 = vmul.f32 %v95, %v96
    %v98 = vadd.f32 %v59, %v97
    %v99 = vmul.f32 %v98, %v88
    %v100 = vadd.f32 %v99, 1e-08
    %v101 = vrsqrt.pop %v100
    %v102 = vmul.f32 %v100, %v101
    %vm103 = vcmp.eq.f32.partialorder %v100, inf
    %v104 = vsel %vm103, %v100, %v102
    %vm105 = vcmp.eq.f32.partialorder %v100, 0.0
    %v106 = vand.u32 %v100, 2147483648
    %v107 = vsel %vm105, %v106, %v104
    %v108 = vsel %vm40, %v107, 0.0
    %v109 = vmul.f32 %v90, %v57
    %v110 = vmul.f32 %v92, %v56
    %v111 = vadd.f32 %v109, %v110
    %v112 = vmul.f32 %v86, %v56
    %v113 = vsel %vm40, %v112, 0.0
    %v114 = vsel %vm79, %v113, 0.0
    %115 = vadd.xlane.f32.xlu0 %v114
    %v116 = vpop.xlane.xlu0 %115
    %v117 = vrot.slane %v116, 4
    %v118 = vadd.f32 %v116, %v117
    %v119 = vrot.slane %v118, 2
    %v120 = vadd.f32 %v118, %v119
    %v121 = vrot.slane %v120, 1
    %v122 = vadd.f32 %v120, %v121
    %s123 = vtos %v122
    %s124 = scalar_lea.smem [#allocation9], 0
    %125 = sst [smem:[%s124]] %s123
    %v126 = vlaneseq
    %v127 = vshrl.u32 %v126, 7
    %vm128 = vcmp.eq.s32.totalorder %v127, 0
    %v129 = vlaneseq
    %v130 = vshrl.u32 %v129, 7
    %v131 = vsub.s32 0, %v130
    %v132 = vrot.slane %v111, %v131
    %v133 = vsel %vm128, %v132, %v62
    %vm134 = vcmp.eq.s32.totalorder %v127, 1
    %v135 = vlaneseq
    %v136 = vshrl.u32 %v135, 7
    %v137 = vsub.s32 0, %v136
    %v138 = vrot.slane %v94, %v137
    %v139 = vsel %vm134, %v138, %v133
    %vm140 = vcmp.eq.s32.totalorder %v127, 2
    %v141 = vlaneseq
    %v142 = vshrl.u32 %v141, 7
    %v143 = vsub.s32 0, %v142
    %v144 = vrot.slane %v98, %v143
    %v145 = vsel %vm140, %v144, %v139
    %vm146 = vcmp.eq.s32.totalorder %v127, 3
    %v147 = vlaneseq
    %v148 = vshrl.u32 %v147, 7
    %v149 = vsub.s32 0, %v148
    %v150 = vrot.slane %v108, %v149
    %v151 = vsel %vm146, %v150, %v145
    %vm152 = vcmp.eq.s32.totalorder %v127, 4
    %v153 = vlaneseq
    %v154 = vshrl.u32 %v153, 7
    %v155 = vsub.s32 0, %v154
    %v156 = vrot.slane %v86, %v155
    %v157 = vsel %vm152, %v156, %v151
    %vm158 = vcmp.eq.s32.totalorder %v127, 5
    %v159 = vlaneseq
    %v160 = vshrl.u32 %v159, 7
    %v161 = vsub.s32 0, %v160
    %v162 = vrot.slane %v63, %v161
    %v163 = vsel %vm158, %v162, %v157
    %v164 = vsel %vm71, 1, 0
    %vm165 = vcmp.eq.s32.totalorder %v164, 1
    %v166 = vsel %vm165, %v62, %v163
    %167 = vst [vmem:[#allocation8] sm:$0xff] %v166
    // Predicated region
    $region18: #{cov_weighted_loss_step.1} parent=1 // pred_check
      _
    $region19: #{cov_weighted_loss_step.1} parent=1 // pred_check_branch
      %169 = sbr.rel (0) target = $region21
    $region20: #{cov_weighted_loss_step.1} parent=1 // pred_region
      %s171 = ssub.s32 128, 128
      %172 = vsyncadd [#allocation4], %s171
      %s174 = sshll.u32 [#allocation8], 4
      %s175 = int_to_ptr.vmem [resolvable:$true] %s174
      %177 = dma.vmem_to_hbm [thread:$0]  %s175, 128, %s2, [#allocation4]
    $region21: #{cov_weighted_loss_step.1} parent=1 // pred_fallthru
      _
    // Predicated region
    $region22: #{cov_weighted_loss_step.1} parent=1 // pred_check
      _
    $region23: #{cov_weighted_loss_step.1} parent=1 // pred_check_branch
      %179 = sbr.rel (0) target = $region25
    $region24: #{cov_weighted_loss_step.1} parent=1 // pred_region
      %s181 = ssub.s32 16, 16
      %182 = vsyncadd [#allocation6], %s181
      %185 = dma.smem_to_hbm [#allocation9], 16, %s3, [#allocation6]
    $region25: #{cov_weighted_loss_step.1} parent=1 // pred_fallthru
      _
    // Predicated region
    $region26: #{cov_weighted_loss_step.1} parent=1 // pred_check
      _
    $region27: #{cov_weighted_loss_step.1} parent=1 // pred_check_branch
      %187 = sbr.rel (0) target = $region29
    $region28: #{cov_weighted_loss_step.1} parent=1 // pred_region
      %188 = dma.done [#allocation4], 128
    $region29: #{cov_weighted_loss_step.1} parent=1 // pred_fallthru
      _
    // Predicated region
    $region30: #{cov_weighted_loss_step.1} parent=1 // pred_check
      _
    $region31: #{cov_weighted_loss_step.1} parent=1 // pred_check_branch
      %190 = sbr.rel (0) target = $region33
    $region32: #{cov_weighted_loss_step.1} parent=1 // pred_region
      %191 = dma.done [#allocation6], 16
    $region33: #{cov_weighted_loss_step.1} parent=1 // pred_fallthru
      _
    %192 = sfence
    %193 = vsyncpa [#allocation3], 1
    %194 = vsyncpa [#allocation4], 1
    %195 = vsyncpa [#allocation5], 1
    %196 = vsyncpa [#allocation6], 1

</llo_original>
